<compile_context>
chip_gen: v7x
topology: tpu7x:2x2x1
jax: 0.10.0
libtpu: 0.0.40
codegen_flags: <defaults>
</compile_context>

<pallas_src>
import jax
import jax.numpy as jnp
from jax.experimental import pallas as pl
from jax.experimental.pallas import tpu as pltpu


def _policy_kernel(xT_ref, w1_ref, b1_ref, w2_ref, b2_ref, o_ref):
    # xT_ref: (4, SB, 128)  f32 VMEM  -- feature-major, batch on (sublane, lane)
    # w1_ref: (4, 10)       f32 SMEM  -- fcA1 weight, stored (in, out)
    # b1_ref: (10,)         f32 SMEM
    # w2_ref: (10, 2)       f32 SMEM  -- fcA2 weight, stored (in, out)
    # b2_ref: (2,)          f32 SMEM
    # o_ref : (2, SB, 128)  f32 VMEM  -- transposed softmax probs (dense slabs)
    xrow = [xT_ref[k] for k in range(4)]            # each (SB, 128), dense

    # Hidden layer + layer-2 folded into the logit difference d = l0 - l1.
    d = None
    for j in range(10):                             # hidden units, unrolled
        hj = w1_ref[0, j] * xrow[0]
        for k in range(1, 4):
            hj = hj + w1_ref[k, j] * xrow[k]
        hj = jnp.maximum(hj + b1_ref[j], 0.0)       # ReLU
        dwj = w2_ref[j, 0] - w2_ref[j, 1]           # scalar (SMEM), once/step
        d = dwj * hj if d is None else d + dwj * hj
    d = d + (b2_ref[0] - b2_ref[1])

    # Two-class softmax == sigmoid of the logit difference:
    #   p1 = exp(l1) / (exp(l0) + exp(l1)) = 1 / (1 + exp(d)),   p0 = 1 - p1.
    p1 = pl.reciprocal(1.0 + jnp.exp(d))            # exact: EUP has slack here
    o_ref[0, :, :] = 1.0 - p1
    o_ref[1, :, :] = p1


def _round_up(n, m):
    return ((n + m - 1) // m) * m


def _cdiv(a, b):
    return -(-a // b)


def _choose_tiling(B, block_b):
    """Pick (bt, B_pad): batch-tile rows and padded batch size.

    Small batches: a single tile of round_up(B, 128) rows (block == full array,
    so the sublane-divisibility requirement is waived).
    Large batches: bt a multiple of 1024 (dense 8-sublane slabs), capped by
    block_b, with >=2 grid steps (v7x megacore) and padding kept small.
    """
    B128 = _round_up(B, 128)
    if B128 < 2048:
        return B128, B128
    n0 = max(2, _cdiv(B, block_b))
    best = None
    for n in range(n0, n0 + 4):
        bt = _round_up(_cdiv(B, n), 1024)
        cand = (n * bt, n, bt)                      # minimize padding, then steps
        if best is None or cand < best:
            best = cand
    B_pad, _, bt = best
    return bt, B_pad


def policy_network_forward(x, w1, b1, w2, b2, *, block_b=16384):
    """x: (B, 4) float32 -> (B, 2) float32 softmax probabilities."""
    B = x.shape[0]
    bt, B_pad = _choose_tiling(B, block_b)
    NB, SB = B_pad // 128, bt // 128

    # NOTE: callers keeping activations in (features, batch) layout end-to-end
    # can feed x^T directly and skip these; under jit they fuse into one small
    # HBM-bound XLA op (the kernel itself streams only ~24 B/row).
    xT = jnp.transpose(x.astype(jnp.float32))             # (4, B)
    if B_pad != B:
        xT = jnp.pad(xT, ((0, 0), (0, B_pad - B)))        # padded cols discarded
    xT3 = xT.reshape(4, NB, 128)                          # free row-major reshape

    out3 = pl.pallas_call(
        _policy_kernel,
        out_shape=jax.ShapeDtypeStruct((2, NB, 128), jnp.float32),
        grid=(B_pad // bt,),
        in_specs=[
            pl.BlockSpec((4, SB, 128), lambda i: (0, i, 0)),     # x^T slab
            pl.BlockSpec(memory_space=pltpu.MemorySpace.SMEM),   # w1
            pl.BlockSpec(memory_space=pltpu.MemorySpace.SMEM),   # b1
            pl.BlockSpec(memory_space=pltpu.MemorySpace.SMEM),   # w2
            pl.BlockSpec(memory_space=pltpu.MemorySpace.SMEM),   # b2
        ],
        out_specs=pl.BlockSpec((2, SB, 128), lambda i: (0, i, 0)),
        compiler_params=pltpu.CompilerParams(
            dimension_semantics=("parallel",)),               # 2 TCs on v7x
    )(xT3, w1, b1, w2, b2)

    return jnp.transpose(out3.reshape(2, B_pad)[:, :B])      # back to (B, 2)


def init_params(key):
    """PyTorch-Linear-style init (uniform +-1/sqrt(fan_in)); weights stored as
    (in_features, out_features) == torch weight.T, biases 1-D."""
    k1, k2, k3, k4 = jax.random.split(key, 4)
    bound1 = 1.0 / jnp.sqrt(4.0)
    bound2 = 1.0 / jnp.sqrt(10.0)
    w1 = jax.random.uniform(k1, (4, 10), jnp.float32, -bound1, bound1)
    b1 = jax.random.uniform(k2, (10,), jnp.float32, -bound1, bound1)
    w2 = jax.random.uniform(k3, (10, 2), jnp.float32, -bound2, bound2)
    b2 = jax.random.uniform(k4, (2,), jnp.float32, -bound2, bound2)
    return w1, b1, w2, b2


def _reference(x, w1, b1, w2, b2):
    h = jnp.maximum(x @ w1 + b1, 0.0)
    return jax.nn.softmax(h @ w2 + b2, axis=-1)


if __name__ == "__main__":
    key = jax.random.PRNGKey(0)
    pkey, xkey, xkey2 = jax.random.split(key, 3)
    w1, b1, w2, b2 = init_params(pkey)

    fwd = jax.jit(policy_network_forward)

    # Small CartPole-like batch (B=8, 4-dim observations): single dense tile.
    x = jax.random.normal(xkey, (8, 4), jnp.float32)
    out = jax.block_until_ready(fwd(x, w1, b1, w2, b2))
    ref = _reference(x, w1, b1, w2, b2)
    assert out.shape == (8, 2)
    assert jnp.allclose(out, ref, atol=1e-5, rtol=1e-5), "mismatch vs ref (B=8)"
    assert jnp.allclose(jnp.sum(out, axis=-1), 1.0, atol=1e-5)

    # Larger batch exercising the multi-step "parallel" grid + padding path.
    xb = jax.random.normal(xkey2, (2500, 4), jnp.float32)
    outb = jax.block_until_ready(fwd(xb, w1, b1, w2, b2))
    refb = _reference(xb, w1, b1, w2, b2)
    assert outb.shape == (2500, 2)
    assert jnp.allclose(outb, refb, atol=1e-5, rtol=1e-5), "mismatch (B=2500)"
    assert jnp.allclose(jnp.sum(outb, axis=-1), 1.0, atol=1e-5)

    print("KERNEL_OK")
</pallas_src>

<mosaic_0001>
module attributes {stable_mosaic.version = 11 : i64} {
  func.func @_policy_kernel(%arg0: i32, %arg1: memref<4x1x128xf32, #tpu.memory_space<vmem>>, %arg2: memref<4x10xf32, #tpu.memory_space<smem>>, %arg3: memref<10xf32, #tpu.memory_space<smem>>, %arg4: memref<10x2xf32, #tpu.memory_space<smem>>, %arg5: memref<2xf32, #tpu.memory_space<smem>>, %arg6: memref<2x1x128xf32, #tpu.memory_space<vmem>>) attributes {dimension_semantics = [#tpu.dimension_semantics<parallel>], iteration_bounds = array<i64: 1>, scalar_prefetch = 0 : i64, scratch_operands = 0 : i64, tpu.core_type = #tpu.core_type<tc>, window_params = [{transform_indices = @transform_0, window_bounds = array<i64: 4, 1, 128>}, {transform_indices = @transform_1, window_bounds = array<i64: 4, 10>}, {transform_indices = @transform_2, window_bounds = array<i64: 10>}, {transform_indices = @transform_3, window_bounds = array<i64: 10, 2>}, {transform_indices = @transform_4, window_bounds = array<i64: 2>}, {transform_indices = @transform_5, window_bounds = array<i64: 2, 1, 128>}]} {
    %c0 = arith.constant 0 : index
    %c0_0 = arith.constant 0 : index
    %c0_1 = arith.constant 0 : index
    %0 = vector.load %arg1[%c0, %c0_0, %c0_1] : memref<4x1x128xf32, #tpu.memory_space<vmem>>, vector<1x1x128xf32>
    %1 = vector.shape_cast %0 : vector<1x1x128xf32> to vector<1x128xf32>
    %c1 = arith.constant 1 : index
    %c0_2 = arith.constant 0 : index
    %c0_3 = arith.constant 0 : index
    %2 = vector.load %arg1[%c1, %c0_2, %c0_3] : memref<4x1x128xf32, #tpu.memory_space<vmem>>, vector<1x1x128xf32>
    %3 = vector.shape_cast %2 : vector<1x1x128xf32> to vector<1x128xf32>
    %c2 = arith.constant 2 : index
    %c0_4 = arith.constant 0 : index
    %c0_5 = arith.constant 0 : index
    %4 = vector.load %arg1[%c2, %c0_4, %c0_5] : memref<4x1x128xf32, #tpu.memory_space<vmem>>, vector<1x1x128xf32>
    %5 = vector.shape_cast %4 : vector<1x1x128xf32> to vector<1x128xf32>
    %c3 = arith.constant 3 : index
    %c0_6 = arith.constant 0 : index
    %c0_7 = arith.constant 0 : index
    %6 = vector.load %arg1[%c3, %c0_6, %c0_7] : memref<4x1x128xf32, #tpu.memory_space<vmem>>, vector<1x1x128xf32>
    %7 = vector.shape_cast %6 : vector<1x1x128xf32> to vector<1x128xf32>
    %c0_8 = arith.constant 0 : index
    %c0_9 = arith.constant 0 : index
    %8 = memref.load %arg2[%c0_8, %c0_9] : memref<4x10xf32, #tpu.memory_space<smem>>
    %9 = vector.broadcast %8 : f32 to vector<1x128xf32>
    %10 = arith.mulf %9, %1 : vector<1x128xf32>
    %c1_10 = arith.constant 1 : index
    %c0_11 = arith.constant 0 : index
    %11 = memref.load %arg2[%c1_10, %c0_11] : memref<4x10xf32, #tpu.memory_space<smem>>
    %12 = vector.broadcast %11 : f32 to vector<1x128xf32>
    %13 = arith.mulf %12, %3 : vector<1x128xf32>
    %14 = arith.addf %10, %13 : vector<1x128xf32>
    %c2_12 = arith.constant 2 : index
    %c0_13 = arith.constant 0 : index
    %15 = memref.load %arg2[%c2_12, %c0_13] : memref<4x10xf32, #tpu.memory_space<smem>>
    %16 = vector.broadcast %15 : f32 to vector<1x128xf32>
    %17 = arith.mulf %16, %5 : vector<1x128xf32>
    %18 = arith.addf %14, %17 : vector<1x128xf32>
    %c3_14 = arith.constant 3 : index
    %c0_15 = arith.constant 0 : index
    %19 = memref.load %arg2[%c3_14, %c0_15] : memref<4x10xf32, #tpu.memory_space<smem>>
    %20 = vector.broadcast %19 : f32 to vector<1x128xf32>
    %21 = arith.mulf %20, %7 : vector<1x128xf32>
    %22 = arith.addf %18, %21 : vector<1x128xf32>
    %c0_16 = arith.constant 0 : index
    %23 = memref.load %arg3[%c0_16] : memref<10xf32, #tpu.memory_space<smem>>
    %24 = vector.broadcast %23 : f32 to vector<1x128xf32>
    %25 = arith.addf %22, %24 : vector<1x128xf32>
    %cst = arith.constant 0.000000e+00 : f32
    %26 = vector.broadcast %cst : f32 to vector<1x128xf32>
    %27 = arith.maximumf %25, %26 : vector<1x128xf32>
    %c0_17 = arith.constant 0 : index
    %c0_18 = arith.constant 0 : index
    %28 = memref.load %arg4[%c0_17, %c0_18] : memref<10x2xf32, #tpu.memory_space<smem>>
    %c0_19 = arith.constant 0 : index
    %c1_20 = arith.constant 1 : index
    %29 = memref.load %arg4[%c0_19, %c1_20] : memref<10x2xf32, #tpu.memory_space<smem>>
    %30 = arith.subf %28, %29 : f32
    %31 = vector.broadcast %30 : f32 to vector<1x128xf32>
    %32 = arith.mulf %31, %27 : vector<1x128xf32>
    %c0_21 = arith.constant 0 : index
    %c1_22 = arith.constant 1 : index
    %33 = memref.load %arg2[%c0_21, %c1_22] : memref<4x10xf32, #tpu.memory_space<smem>>
    %34 = vector.broadcast %33 : f32 to vector<1x128xf32>
    %35 = arith.mulf %34, %1 : vector<1x128xf32>
    %c1_23 = arith.constant 1 : index
    %c1_24 = arith.constant 1 : index
    %36 = memref.load %arg2[%c1_23, %c1_24] : memref<4x10xf32, #tpu.memory_space<smem>>
    %37 = vector.broadcast %36 : f32 to vector<1x128xf32>
    %38 = arith.mulf %37, %3 : vector<1x128xf32>
    %39 = arith.addf %35, %38 : vector<1x128xf32>
    %c2_25 = arith.constant 2 : index
    %c1_26 = arith.constant 1 : index
    %40 = memref.load %arg2[%c2_25, %c1_26] : memref<4x10xf32, #tpu.memory_space<smem>>
    %41 = vector.broadcast %40 : f32 to vector<1x128xf32>
    %42 = arith.mulf %41, %5 : vector<1x128xf32>
    %43 = arith.addf %39, %42 : vector<1x128xf32>
    %c3_27 = arith.constant 3 : index
    %c1_28 = arith.constant 1 : index
    %44 = memref.load %arg2[%c3_27, %c1_28] : memref<4x10xf32, #tpu.memory_space<smem>>
    %45 = vector.broadcast %44 : f32 to vector<1x128xf32>
    %46 = arith.mulf %45, %7 : vector<1x128xf32>
    %47 = arith.addf %43, %46 : vector<1x128xf32>
    %c1_29 = arith.constant 1 : index
    %48 = memref.load %arg3[%c1_29] : memref<10xf32, #tpu.memory_space<smem>>
    %49 = vector.broadcast %48 : f32 to vector<1x128xf32>
    %50 = arith.addf %47, %49 : vector<1x128xf32>
    %cst_30 = arith.constant 0.000000e+00 : f32
    %51 = vector.broadcast %cst_30 : f32 to vector<1x128xf32>
    %52 = arith.maximumf %50, %51 : vector<1x128xf32>
    %c1_31 = arith.constant 1 : index
    %c0_32 = arith.constant 0 : index
    %53 = memref.load %arg4[%c1_31, %c0_32] : memref<10x2xf32, #tpu.memory_space<smem>>
    %c1_33 = arith.constant 1 : index
    %c1_34 = arith.constant 1 : index
    %54 = memref.load %arg4[%c1_33, %c1_34] : memref<10x2xf32, #tpu.memory_space<smem>>
    %55 = arith.subf %53, %54 : f32
    %56 = vector.broadcast %55 : f32 to vector<1x128xf32>
    %57 = arith.mulf %56, %52 : vector<1x128xf32>
    %58 = arith.addf %32, %57 : vector<1x128xf32>
    %c0_35 = arith.constant 0 : index
    %c2_36 = arith.constant 2 : index
    %59 = memref.load %arg2[%c0_35, %c2_36] : memref<4x10xf32, #tpu.memory_space<smem>>
    %60 = vector.broadcast %59 : f32 to vector<1x128xf32>
    %61 = arith.mulf %60, %1 : vector<1x128xf32>
    %c1_37 = arith.constant 1 : index
    %c2_38 = arith.constant 2 : index
    %62 = memref.load %arg2[%c1_37, %c2_38] : memref<4x10xf32, #tpu.memory_space<smem>>
    %63 = vector.broadcast %62 : f32 to vector<1x128xf32>
    %64 = arith.mulf %63, %3 : vector<1x128xf32>
    %65 = arith.addf %61, %64 : vector<1x128xf32>
    %c2_39 = arith.constant 2 : index
    %c2_40 = arith.constant 2 : index
    %66 = memref.load %arg2[%c2_39, %c2_40] : memref<4x10xf32, #tpu.memory_space<smem>>
    %67 = vector.broadcast %66 : f32 to vector<1x128xf32>
    %68 = arith.mulf %67, %5 : vector<1x128xf32>
    %69 = arith.addf %65, %68 : vector<1x128xf32>
    %c3_41 = arith.constant 3 : index
    %c2_42 = arith.constant 2 : index
    %70 = memref.load %arg2[%c3_41, %c2_42] : memref<4x10xf32, #tpu.memory_space<smem>>
    %71 = vector.broadcast %70 : f32 to vector<1x128xf32>
    %72 = arith.mulf %71, %7 : vector<1x128xf32>
    %73 = arith.addf %69, %72 : vector<1x128xf32>
    %c2_43 = arith.constant 2 : index
    %74 = memref.load %arg3[%c2_43] : memref<10xf32, #tpu.memory_space<smem>>
    %75 = vector.broadcast %74 : f32 to vector<1x128xf32>
    %76 = arith.addf %73, %75 : vector<1x128xf32>
    %cst_44 = arith.constant 0.000000e+00 : f32
    %77 = vector.broadcast %cst_44 : f32 to vector<1x128xf32>
    %78 = arith.maximumf %76, %77 : vector<1x128xf32>
    %c2_45 = arith.constant 2 : index
    %c0_46 = arith.constant 0 : index
    %79 = memref.load %arg4[%c2_45, %c0_46] : memref<10x2xf32, #tpu.memory_space<smem>>
    %c2_47 = arith.constant 2 : index
    %c1_48 = arith.constant 1 : index
    %80 = memref.load %arg4[%c2_47, %c1_48] : memref<10x2xf32, #tpu.memory_space<smem>>
    %81 = arith.subf %79, %80 : f32
    %82 = vector.broadcast %81 : f32 to vector<1x128xf32>
    %83 = arith.mulf %82, %78 : vector<1x128xf32>
    %84 = arith.addf %58, %83 : vector<1x128xf32>
    %c0_49 = arith.constant 0 : index
    %c3_50 = arith.constant 3 : index
    %85 = memref.load %arg2[%c0_49, %c3_50] : memref<4x10xf32, #tpu.memory_space<smem>>
    %86 = vector.broadcast %85 : f32 to vector<1x128xf32>
    %87 = arith.mulf %86, %1 : vector<1x128xf32>
    %c1_51 = arith.constant 1 : index
    %c3_52 = arith.constant 3 : index
    %88 = memref.load %arg2[%c1_51, %c3_52] : memref<4x10xf32, #tpu.memory_space<smem>>
    %89 = vector.broadcast %88 : f32 to vector<1x128xf32>
    %90 = arith.mulf %89, %3 : vector<1x128xf32>
    %91 = arith.addf %87, %90 : vector<1x128xf32>
    %c2_53 = arith.constant 2 : index
    %c3_54 = arith.constant 3 : index
    %92 = memref.load %arg2[%c2_53, %c3_54] : memref<4x10xf32, #tpu.memory_space<smem>>
    %93 = vector.broadcast %92 : f32 to vector<1x128xf32>
    %94 = arith.mulf %93, %5 : vector<1x128xf32>
    %95 = arith.addf %91, %94 : vector<1x128xf32>
    %c3_55 = arith.constant 3 : index
    %c3_56 = arith.constant 3 : index
    %96 = memref.load %arg2[%c3_55, %c3_56] : memref<4x10xf32, #tpu.memory_space<smem>>
    %97 = vector.broadcast %96 : f32 to vector<1x128xf32>
    %98 = arith.mulf %97, %7 : vector<1x128xf32>
    %99 = arith.addf %95, %98 : vector<1x128xf32>
    %c3_57 = arith.constant 3 : index
    %100 = memref.load %arg3[%c3_57] : memref<10xf32, #tpu.memory_space<smem>>
    %101 = vector.broadcast %100 : f32 to vector<1x128xf32>
    %102 = arith.addf %99, %101 : vector<1x128xf32>
    %cst_58 = arith.constant 0.000000e+00 : f32
    %103 = vector.broadcast %cst_58 : f32 to vector<1x128xf32>
    %104 = arith.maximumf %102, %103 : vector<1x128xf32>
    %c3_59 = arith.constant 3 : index
    %c0_60 = arith.constant 0 : index
    %105 = memref.load %arg4[%c3_59, %c0_60] : memref<10x2xf32, #tpu.memory_space<smem>>
    %c3_61 = arith.constant 3 : index
    %c1_62 = arith.constant 1 : index
    %106 = memref.load %arg4[%c3_61, %c1_62] : memref<10x2xf32, #tpu.memory_space<smem>>
    %107 = arith.subf %105, %106 : f32
    %108 = vector.broadcast %107 : f32 to vector<1x128xf32>
    %109 = arith.mulf %108, %104 : vector<1x128xf32>
    %110 = arith.addf %84, %109 : vector<1x128xf32>
    %c0_63 = arith.constant 0 : index
    %c4 = arith.constant 4 : index
    %111 = memref.load %arg2[%c0_63, %c4] : memref<4x10xf32, #tpu.memory_space<smem>>
    %112 = vector.broadcast %111 : f32 to vector<1x128xf32>
    %113 = arith.mulf %112, %1 : vector<1x128xf32>
    %c1_64 = arith.constant 1 : index
    %c4_65 = arith.constant 4 : index
    %114 = memref.load %arg2[%c1_64, %c4_65] : memref<4x10xf32, #tpu.memory_space<smem>>
    %115 = vector.broadcast %114 : f32 to vector<1x128xf32>
    %116 = arith.mulf %115, %3 : vector<1x128xf32>
    %117 = arith.addf %113, %116 : vector<1x128xf32>
    %c2_66 = arith.constant 2 : index
    %c4_67 = arith.constant 4 : index
    %118 = memref.load %arg2[%c2_66, %c4_67] : memref<4x10xf32, #tpu.memory_space<smem>>
    %119 = vector.broadcast %118 : f32 to vector<1x128xf32>
    %120 = arith.mulf %119, %5 : vector<1x128xf32>
    %121 = arith.addf %117, %120 : vector<1x128xf32>
    %c3_68 = arith.constant 3 : index
    %c4_69 = arith.constant 4 : index
    %122 = memref.load %arg2[%c3_68, %c4_69] : memref<4x10xf32, #tpu.memory_space<smem>>
    %123 = vector.broadcast %122 : f32 to vector<1x128xf32>
    %124 = arith.mulf %123, %7 : vector<1x128xf32>
    %125 = arith.addf %121, %124 : vector<1x128xf32>
    %c4_70 = arith.constant 4 : index
    %126 = memref.load %arg3[%c4_70] : memref<10xf32, #tpu.memory_space<smem>>
    %127 = vector.broadcast %126 : f32 to vector<1x128xf32>
    %128 = arith.addf %125, %127 : vector<1x128xf32>
    %cst_71 = arith.constant 0.000000e+00 : f32
    %129 = vector.broadcast %cst_71 : f32 to vector<1x128xf32>
    %130 = arith.maximumf %128, %129 : vector<1x128xf32>
    %c4_72 = arith.constant 4 : index
    %c0_73 = arith.constant 0 : index
    %131 = memref.load %arg4[%c4_72, %c0_73] : memref<10x2xf32, #tpu.memory_space<smem>>
    %c4_74 = arith.constant 4 : index
    %c1_75 = arith.constant 1 : index
    %132 = memref.load %arg4[%c4_74, %c1_75] : memref<10x2xf32, #tpu.memory_space<smem>>
    %133 = arith.subf %131, %132 : f32
    %134 = vector.broadcast %133 : f32 to vector<1x128xf32>
    %135 = arith.mulf %134, %130 : vector<1x128xf32>
    %136 = arith.addf %110, %135 : vector<1x128xf32>
    %c0_76 = arith.constant 0 : index
    %c5 = arith.constant 5 : index
    %137 = memref.load %arg2[%c0_76, %c5] : memref<4x10xf32, #tpu.memory_space<smem>>
    %138 = vector.broadcast %137 : f32 to vector<1x128xf32>
    %139 = arith.mulf %138, %1 : vector<1x128xf32>
    %c1_77 = arith.constant 1 : index
    %c5_78 = arith.constant 5 : index
    %140 = memref.load %arg2[%c1_77, %c5_78] : memref<4x10xf32, #tpu.memory_space<smem>>
    %141 = vector.broadcast %140 : f32 to vector<1x128xf32>
    %142 = arith.mulf %141, %3 : vector<1x128xf32>
    %143 = arith.addf %139, %142 : vector<1x128xf32>
    %c2_79 = arith.constant 2 : index
    %c5_80 = arith.constant 5 : index
    %144 = memref.load %arg2[%c2_79, %c5_80] : memref<4x10xf32, #tpu.memory_space<smem>>
    %145 = vector.broadcast %144 : f32 to vector<1x128xf32>
    %146 = arith.mulf %145, %5 : vector<1x128xf32>
    %147 = arith.addf %143, %146 : vector<1x128xf32>
    %c3_81 = arith.constant 3 : index
    %c5_82 = arith.constant 5 : index
    %148 = memref.load %arg2[%c3_81, %c5_82] : memref<4x10xf32, #tpu.memory_space<smem>>
    %149 = vector.broadcast %148 : f32 to vector<1x128xf32>
    %150 = arith.mulf %149, %7 : vector<1x128xf32>
    %151 = arith.addf %147, %150 : vector<1x128xf32>
    %c5_83 = arith.constant 5 : index
    %152 = memref.load %arg3[%c5_83] : memref<10xf32, #tpu.memory_space<smem>>
    %153 = vector.broadcast %152 : f32 to vector<1x128xf32>
    %154 = arith.addf %151, %153 : vector<1x128xf32>
    %cst_84 = arith.constant 0.000000e+00 : f32
    %155 = vector.broadcast %cst_84 : f32 to vector<1x128xf32>
    %156 = arith.maximumf %154, %155 : vector<1x128xf32>
    %c5_85 = arith.constant 5 : index
    %c0_86 = arith.constant 0 : index
    %157 = memref.load %arg4[%c5_85, %c0_86] : memref<10x2xf32, #tpu.memory_space<smem>>
    %c5_87 = arith.constant 5 : index
    %c1_88 = arith.constant 1 : index
    %158 = memref.load %arg4[%c5_87, %c1_88] : memref<10x2xf32, #tpu.memory_space<smem>>
    %159 = arith.subf %157, %158 : f32
    %160 = vector.broadcast %159 : f32 to vector<1x128xf32>
    %161 = arith.mulf %160, %156 : vector<1x128xf32>
    %162 = arith.addf %136, %161 : vector<1x128xf32>
    %c0_89 = arith.constant 0 : index
    %c6 = arith.constant 6 : index
    %163 = memref.load %arg2[%c0_89, %c6] : memref<4x10xf32, #tpu.memory_space<smem>>
    %164 = vector.broadcast %163 : f32 to vector<1x128xf32>
    %165 = arith.mulf %164, %1 : vector<1x128xf32>
    %c1_90 = arith.constant 1 : index
    %c6_91 = arith.constant 6 : index
    %166 = memref.load %arg2[%c1_90, %c6_91] : memref<4x10xf32, #tpu.memory_space<smem>>
    %167 = vector.broadcast %166 : f32 to vector<1x128xf32>
    %168 = arith.mulf %167, %3 : vector<1x128xf32>
    %169 = arith.addf %165, %168 : vector<1x128xf32>
    %c2_92 = arith.constant 2 : index
    %c6_93 = arith.constant 6 : index
    %170 = memref.load %arg2[%c2_92, %c6_93] : memref<4x10xf32, #tpu.memory_space<smem>>
    %171 = vector.broadcast %170 : f32 to vector<1x128xf32>
    %172 = arith.mulf %171, %5 : vector<1x128xf32>
    %173 = arith.addf %169, %172 : vector<1x128xf32>
    %c3_94 = arith.constant 3 : index
    %c6_95 = arith.constant 6 : index
    %174 = memref.load %arg2[%c3_94, %c6_95] : memref<4x10xf32, #tpu.memory_space<smem>>
    %175 = vector.broadcast %174 : f32 to vector<1x128xf32>
    %176 = arith.mulf %175, %7 : vector<1x128xf32>
    %177 = arith.addf %173, %176 : vector<1x128xf32>
    %c6_96 = arith.constant 6 : index
    %178 = memref.load %arg3[%c6_96] : memref<10xf32, #tpu.memory_space<smem>>
    %179 = vector.broadcast %178 : f32 to vector<1x128xf32>
    %180 = arith.addf %177, %179 : vector<1x128xf32>
    %cst_97 = arith.constant 0.000000e+00 : f32
    %181 = vector.broadcast %cst_97 : f32 to vector<1x128xf32>
    %182 = arith.maximumf %180, %181 : vector<1x128xf32>
    %c6_98 = arith.constant 6 : index
    %c0_99 = arith.constant 0 : index
    %183 = memref.load %arg4[%c6_98, %c0_99] : memref<10x2xf32, #tpu.memory_space<smem>>
    %c6_100 = arith.constant 6 : index
    %c1_101 = arith.constant 1 : index
    %184 = memref.load %arg4[%c6_100, %c1_101] : memref<10x2xf32, #tpu.memory_space<smem>>
    %185 = arith.subf %183, %184 : f32
    %186 = vector.broadcast %185 : f32 to vector<1x128xf32>
    %187 = arith.mulf %186, %182 : vector<1x128xf32>
    %188 = arith.addf %162, %187 : vector<1x128xf32>
    %c0_102 = arith.constant 0 : index
    %c7 = arith.constant 7 : index
    %189 = memref.load %arg2[%c0_102, %c7] : memref<4x10xf32, #tpu.memory_space<smem>>
    %190 = vector.broadcast %189 : f32 to vector<1x128xf32>
    %191 = arith.mulf %190, %1 : vector<1x128xf32>
    %c1_103 = arith.constant 1 : index
    %c7_104 = arith.constant 7 : index
    %192 = memref.load %arg2[%c1_103, %c7_104] : memref<4x10xf32, #tpu.memory_space<smem>>
    %193 = vector.broadcast %192 : f32 to vector<1x128xf32>
    %194 = arith.mulf %193, %3 : vector<1x128xf32>
    %195 = arith.addf %191, %194 : vector<1x128xf32>
    %c2_105 = arith.constant 2 : index
    %c7_106 = arith.constant 7 : index
    %196 = memref.load %arg2[%c2_105, %c7_106] : memref<4x10xf32, #tpu.memory_space<smem>>
    %197 = vector.broadcast %196 : f32 to vector<1x128xf32>
    %198 = arith.mulf %197, %5 : vector<1x128xf32>
    %199 = arith.addf %195, %198 : vector<1x128xf32>
    %c3_107 = arith.constant 3 : index
    %c7_108 = arith.constant 7 : index
    %200 = memref.load %arg2[%c3_107, %c7_108] : memref<4x10xf32, #tpu.memory_space<smem>>
    %201 = vector.broadcast %200 : f32 to vector<1x128xf32>
    %202 = arith.mulf %201, %7 : vector<1x128xf32>
    %203 = arith.addf %199, %202 : vector<1x128xf32>
    %c7_109 = arith.constant 7 : index
    %204 = memref.load %arg3[%c7_109] : memref<10xf32, #tpu.memory_space<smem>>
    %205 = vector.broadcast %204 : f32 to vector<1x128xf32>
    %206 = arith.addf %203, %205 : vector<1x128xf32>
    %cst_110 = arith.constant 0.000000e+00 : f32
    %207 = vector.broadcast %cst_110 : f32 to vector<1x128xf32>
    %208 = arith.maximumf %206, %207 : vector<1x128xf32>
    %c7_111 = arith.constant 7 : index
    %c0_112 = arith.constant 0 : index
    %209 = memref.load %arg4[%c7_111, %c0_112] : memref<10x2xf32, #tpu.memory_space<smem>>
    %c7_113 = arith.constant 7 : index
    %c1_114 = arith.constant 1 : index
    %210 = memref.load %arg4[%c7_113, %c1_114] : memref<10x2xf32, #tpu.memory_space<smem>>
    %211 = arith.subf %209, %210 : f32
    %212 = vector.broadcast %211 : f32 to vector<1x128xf32>
    %213 = arith.mulf %212, %208 : vector<1x128xf32>
    %214 = arith.addf %188, %213 : vector<1x128xf32>
    %c0_115 = arith.constant 0 : index
    %c8 = arith.constant 8 : index
    %215 = memref.load %arg2[%c0_115, %c8] : memref<4x10xf32, #tpu.memory_space<smem>>
    %216 = vector.broadcast %215 : f32 to vector<1x128xf32>
    %217 = arith.mulf %216, %1 : vector<1x128xf32>
    %c1_116 = arith.constant 1 : index
    %c8_117 = arith.constant 8 : index
    %218 = memref.load %arg2[%c1_116, %c8_117] : memref<4x10xf32, #tpu.memory_space<smem>>
    %219 = vector.broadcast %218 : f32 to vector<1x128xf32>
    %220 = arith.mulf %219, %3 : vector<1x128xf32>
    %221 = arith.addf %217, %220 : vector<1x128xf32>
    %c2_118 = arith.constant 2 : index
    %c8_119 = arith.constant 8 : index
    %222 = memref.load %arg2[%c2_118, %c8_119] : memref<4x10xf32, #tpu.memory_space<smem>>
    %223 = vector.broadcast %222 : f32 to vector<1x128xf32>
    %224 = arith.mulf %223, %5 : vector<1x128xf32>
    %225 = arith.addf %221, %224 : vector<1x128xf32>
    %c3_120 = arith.constant 3 : index
    %c8_121 = arith.constant 8 : index
    %226 = memref.load %arg2[%c3_120, %c8_121] : memref<4x10xf32, #tpu.memory_space<smem>>
    %227 = vector.broadcast %226 : f32 to vector<1x128xf32>
    %228 = arith.mulf %227, %7 : vector<1x128xf32>
    %229 = arith.addf %225, %228 : vector<1x128xf32>
    %c8_122 = arith.constant 8 : index
    %230 = memref.load %arg3[%c8_122] : memref<10xf32, #tpu.memory_space<smem>>
    %231 = vector.broadcast %230 : f32 to vector<1x128xf32>
    %232 = arith.addf %229, %231 : vector<1x128xf32>
    %cst_123 = arith.constant 0.000000e+00 : f32
    %233 = vector.broadcast %cst_123 : f32 to vector<1x128xf32>
    %234 = arith.maximumf %232, %233 : vector<1x128xf32>
    %c8_124 = arith.constant 8 : index
    %c0_125 = arith.constant 0 : index
    %235 = memref.load %arg4[%c8_124, %c0_125] : memref<10x2xf32, #tpu.memory_space<smem>>
    %c8_126 = arith.constant 8 : index
    %c1_127 = arith.constant 1 : index
    %236 = memref.load %arg4[%c8_126, %c1_127] : memref<10x2xf32, #tpu.memory_space<smem>>
    %237 = arith.subf %235, %236 : f32
    %238 = vector.broadcast %237 : f32 to vector<1x128xf32>
    %239 = arith.mulf %238, %234 : vector<1x128xf32>
    %240 = arith.addf %214, %239 : vector<1x128xf32>
    %c0_128 = arith.constant 0 : index
    %c9 = arith.constant 9 : index
    %241 = memref.load %arg2[%c0_128, %c9] : memref<4x10xf32, #tpu.memory_space<smem>>
    %242 = vector.broadcast %241 : f32 to vector<1x128xf32>
    %243 = arith.mulf %242, %1 : vector<1x128xf32>
    %c1_129 = arith.constant 1 : index
    %c9_130 = arith.constant 9 : index
    %244 = memref.load %arg2[%c1_129, %c9_130] : memref<4x10xf32, #tpu.memory_space<smem>>
    %245 = vector.broadcast %244 : f32 to vector<1x128xf32>
    %246 = arith.mulf %245, %3 : vector<1x128xf32>
    %247 = arith.addf %243, %246 : vector<1x128xf32>
    %c2_131 = arith.constant 2 : index
    %c9_132 = arith.constant 9 : index
    %248 = memref.load %arg2[%c2_131, %c9_132] : memref<4x10xf32, #tpu.memory_space<smem>>
    %249 = vector.broadcast %248 : f32 to vector<1x128xf32>
    %250 = arith.mulf %249, %5 : vector<1x128xf32>
    %251 = arith.addf %247, %250 : vector<1x128xf32>
    %c3_133 = arith.constant 3 : index
    %c9_134 = arith.constant 9 : index
    %252 = memref.load %arg2[%c3_133, %c9_134] : memref<4x10xf32, #tpu.memory_space<smem>>
    %253 = vector.broadcast %252 : f32 to vector<1x128xf32>
    %254 = arith.mulf %253, %7 : vector<1x128xf32>
    %255 = arith.addf %251, %254 : vector<1x128xf32>
    %c9_135 = arith.constant 9 : index
    %256 = memref.load %arg3[%c9_135] : memref<10xf32, #tpu.memory_space<smem>>
    %257 = vector.broadcast %256 : f32 to vector<1x128xf32>
    %258 = arith.addf %255, %257 : vector<1x128xf32>
    %cst_136 = arith.constant 0.000000e+00 : f32
    %259 = vector.broadcast %cst_136 : f32 to vector<1x128xf32>
    %260 = arith.maximumf %258, %259 : vector<1x128xf32>
    %c9_137 = arith.constant 9 : index
    %c0_138 = arith.constant 0 : index
    %261 = memref.load %arg4[%c9_137, %c0_138] : memref<10x2xf32, #tpu.memory_space<smem>>
    %c9_139 = arith.constant 9 : index
    %c1_140 = arith.constant 1 : index
    %262 = memref.load %arg4[%c9_139, %c1_140] : memref<10x2xf32, #tpu.memory_space<smem>>
    %263 = arith.subf %261, %262 : f32
    %264 = vector.broadcast %263 : f32 to vector<1x128xf32>
    %265 = arith.mulf %264, %260 : vector<1x128xf32>
    %266 = arith.addf %240, %265 : vector<1x128xf32>
    %c0_141 = arith.constant 0 : index
    %267 = memref.load %arg5[%c0_141] : memref<2xf32, #tpu.memory_space<smem>>
    %c1_142 = arith.constant 1 : index
    %268 = memref.load %arg5[%c1_142] : memref<2xf32, #tpu.memory_space<smem>>
    %269 = arith.subf %267, %268 : f32
    %270 = vector.broadcast %269 : f32 to vector<1x128xf32>
    %271 = arith.addf %266, %270 : vector<1x128xf32>
    %272 = math.exp %271 : vector<1x128xf32>
    %cst_143 = arith.constant 1.000000e+00 : f32
    %273 = vector.broadcast %cst_143 : f32 to vector<1x128xf32>
    %274 = arith.addf %273, %272 : vector<1x128xf32>
    %275 = tpu.reciprocal %274 : vector<1x128xf32> -> vector<1x128xf32>
    %cst_144 = arith.constant 1.000000e+00 : f32
    %276 = vector.broadcast %cst_144 : f32 to vector<1x128xf32>
    %277 = arith.subf %276, %275 : vector<1x128xf32>
    %c0_145 = arith.constant 0 : index
    %c0_146 = arith.constant 0 : index
    %c0_147 = arith.constant 0 : index
    %278 = vector.load %arg6[%c0_145, %c0_146, %c0_147] : memref<2x1x128xf32, #tpu.memory_space<vmem>>, vector<1x1x128xf32>
    %279 = vector.shape_cast %278 : vector<1x1x128xf32> to vector<1x128xf32>
    %280 = vector.shape_cast %277 : vector<1x128xf32> to vector<1x1x128xf32>
    tpu.vector_store %arg6[%c0_145, %c0_146, %c0_147], %280 {strides = array<i32>} : memref<2x1x128xf32, #tpu.memory_space<vmem>>, vector<1x1x128xf32>,
    %c1_148 = arith.constant 1 : index
    %c0_149 = arith.constant 0 : index
    %c0_150 = arith.constant 0 : index
    %281 = vector.load %arg6[%c1_148, %c0_149, %c0_150] : memref<2x1x128xf32, #tpu.memory_space<vmem>>, vector<1x1x128xf32>
    %282 = vector.shape_cast %281 : vector<1x1x128xf32> to vector<1x128xf32>
    %283 = vector.shape_cast %275 : vector<1x128xf32> to vector<1x1x128xf32>
    tpu.vector_store %arg6[%c1_148, %c0_149, %c0_150], %283 {strides = array<i32>} : memref<2x1x128xf32, #tpu.memory_space<vmem>>, vector<1x1x128xf32>,
    return
  }
  func.func @transform_0(%arg0: i32) -> (i32, i32, i32) {
    %c0_i32 = arith.constant 0 : i32
    %c0_i32_0 = arith.constant 0 : i32
    %c0_i32_1 = arith.constant 0 : i32
    return %c0_i32, %arg0, %c0_i32_0 : i32, i32, i32
  }
  func.func @transform_1(%arg0: i32) -> (i32, i32) {
    %c0_i32 = arith.constant 0 : i32
    %c0_i32_0 = arith.constant 0 : i32
    %c0_i32_1 = arith.constant 0 : i32
    return %c0_i32, %c0_i32_0 : i32, i32
  }
  func.func @transform_2(%arg0: i32) -> i32 {
    %c0_i32 = arith.constant 0 : i32
    %c0_i32_0 = arith.constant 0 : i32
    return %c0_i32 : i32
  }
  func.func @transform_3(%arg0: i32) -> (i32, i32) {
    %c0_i32 = arith.constant 0 : i32
    %c0_i32_0 = arith.constant 0 : i32
    %c0_i32_1 = arith.constant 0 : i32
    return %c0_i32, %c0_i32_0 : i32, i32
  }
  func.func @transform_4(%arg0: i32) -> i32 {
    %c0_i32 = arith.constant 0 : i32
    %c0_i32_0 = arith.constant 0 : i32
    return %c0_i32 : i32
  }
  func.func @transform_5(%arg0: i32) -> (i32, i32, i32) {
    %c0_i32 = arith.constant 0 : i32
    %c0_i32_0 = arith.constant 0 : i32
    %c0_i32_1 = arith.constant 0 : i32
    return %c0_i32, %arg0, %c0_i32_0 : i32, i32, i32
  }
}

</mosaic_0001>

<llo_original>
// kernel: policy_network_forward.1
$region0: #{policy_network_forward.1}
  #allocation0 [shape = 'u32[]', space=smem, size = 0x4, offset = 0x4, fixed_abs, tag = 'smem constant byte address 0x4 - core index']
  #allocation1 [shape = 'u32[144,128]{1,0:T(1,128)}', space=vmem, size = 0x12000, scoped, tag = 'internal scratch']
  %s0 = inlined_call_operand.vmem [shape: f32[4,1,128], index: 0, kind: input, shape index: {}]
  %s1 = inlined_call_operand.vmem [shape: f32[4,10], index: 1, kind: input, shape index: {}]
  %s2 = inlined_call_operand.vmem [shape: f32[10], index: 2, kind: input, shape index: {}]
  %s3 = inlined_call_operand.vmem [shape: f32[10,2], index: 3, kind: input, shape index: {}]
  %s4 = inlined_call_operand.vmem [shape: f32[2], index: 4, kind: input, shape index: {}]
  %s5 = inlined_call_operand.vmem [shape: f32[2,1,128], index: 5, kind: output, shape index: {}]
  %s6 = sld [smem:[#allocation0]]
  $region46: #{policy_network_forward.1} parent=0
    _
  %s8 = ssub.s32 1, %s6
  %s9 = scalar_select 0, %s8, %s6
  $region1: #{policy_network_forward.1} parent=0
    #allocation2 [shape = 'u8[2048]{0}', space=smem, size = 0x800, scoped, tag = 'input window, operand 1, single buffered']
    #allocation3 [shape = 's32[1]{0}', space=sflag, size = 0x4, scoped, tag = 'scoped memory for policy_network_forward.1']
    #allocation4 [shape = 'u8[512]{0}', space=smem, size = 0x200, scoped, tag = 'input window, operand 2, single buffered']
    #allocation5 [shape = 's32[1]{0}', space=sflag, size = 0x4, scoped, tag = 'scoped memory for policy_network_forward.1']
    #allocation6 [shape = 'u8[8192]{0}', space=smem, size = 0x2000, scoped, tag = 'input window, operand 3, single buffered']
    #allocation7 [shape = 'u8[512]{0}', space=smem, size = 0x200, scoped, tag = 'input window, operand 4, single buffered']
    #allocation8 [shape = 's32[1]{0}', space=sflag, size = 0x4, scoped, tag = 'scoped memory for policy_network_forward.1']
    %10 = vsyncpa [#allocation3], 0
    %11 = vsyncpa [#allocation5], 0
    %12 = vsyncpa [#allocation8], 0
    // Predicated region
    $region2: #{policy_network_forward.1} parent=1 // pred_check
      _
    $region3: #{policy_network_forward.1} parent=1 // pred_check_branch
      %14 = sbr.rel (0) target = $region5
    $region4: #{policy_network_forward.1} parent=1 // pred_region
      _
    $region5: #{policy_network_forward.1} parent=1 // pred_fallthru
      _
    // Predicated region
    $region6: #{policy_network_forward.1} parent=1 // pred_check
      _
    $region7: #{policy_network_forward.1} parent=1 // pred_check_branch
      %16 = sbr.rel (0) target = $region9
    $region8: #{policy_network_forward.1} parent=1 // pred_region
      %s18 = ssub.s32 64, 64
      %19 = vsyncadd [#allocation3], %s18
      %s21 = sshll.u32 %s1, 4
      %s22 = int_to_ptr.vmem [resolvable:$true] %s21
      %24 = dma.vmem_to_smem %s22, 64, [#allocation2], [#allocation3]
    $region9: #{policy_network_forward.1} parent=1 // pred_fallthru
      _
    // Predicated region
    $region10: #{policy_network_forward.1} parent=1 // pred_check
      _
    $region11: #{policy_network_forward.1} parent=1 // pred_check_branch
      %26 = sbr.rel (0) target = $region13
    $region12: #{policy_network_forward.1} parent=1 // pred_region
      %s28 = ssub.s32 16, 16
      %29 = vsyncadd [#allocation5], %s28
      %s31 = sshll.u32 %s2, 4
      %s32 = int_to_ptr.vmem [resolvable:$true] %s31
      %34 = dma.vmem_to_smem %s32, 16, [#allocation4], [#allocation5]
    $region13: #{policy_network_forward.1} parent=1 // pred_fallthru
      _
    // Predicated region
    $region14: #{policy_network_forward.1} parent=1 // pred_check
      _
    $region15: #{policy_network_forward.1} parent=1 // pred_check_branch
      %36 = sbr.rel (0) target = $region17
    $region16: #{policy_network_forward.1} parent=1 // pred_region
      %s38 = ssub.s32 256, 256
      %39 = vsyncadd [#allocation5], %s38
      %s40 = sshll.u32 %s3, 4
      %s41 = int_to_ptr.vmem [resolvable:$true] %s40
      %46 = dma.vmem_to_smem %s41, 256, [#allocation6], [#allocation5], 128, 128, 8
    $region17: #{policy_network_forward.1} parent=1 // pred_fallthru
      _
    // Predicated region
    $region18: #{policy_network_forward.1} parent=1 // pred_check
      _
    $region19: #{policy_network_forward.1} parent=1 // pred_check_branch
      %48 = sbr.rel (0) target = $region21
    $region20: #{policy_network_forward.1} parent=1 // pred_region
      %s50 = ssub.s32 16, 16
      %51 = vsyncadd [#allocation8], %s50
      %s53 = sshll.u32 %s4, 4
      %s54 = int_to_ptr.vmem [resolvable:$true] %s53
      %56 = dma.vmem_to_smem %s54, 16, [#allocation7], [#allocation8]
    $region21: #{policy_network_forward.1} parent=1 // pred_fallthru
      _
    // Predicated region
    $region22: #{policy_network_forward.1} parent=1 // pred_check
      _
    $region23: #{policy_network_forward.1} parent=1 // pred_check_branch
      %58 = sbr.rel (0) target = $region25
    $region24: #{policy_network_forward.1} parent=1 // pred_region
      %59 = dma.done [#allocation3], 64
    $region25: #{policy_network_forward.1} parent=1 // pred_fallthru
      _
    // Predicated region
    $region26: #{policy_network_forward.1} parent=1 // pred_check
      _
    $region27: #{policy_network_forward.1} parent=1 // pred_check_branch
      %61 = sbr.rel (0) target = $region29
    $region28: #{policy_network_forward.1} parent=1 // pred_region
      %62 = dma.done [#allocation5], 16
    $region29: #{policy_network_forward.1} parent=1 // pred_fallthru
      _
    // Predicated region
    $region30: #{policy_network_forward.1} parent=1 // pred_check
      _
    $region31: #{policy_network_forward.1} parent=1 // pred_check_branch
      %64 = sbr.rel (0) target = $region33
    $region32: #{policy_network_forward.1} parent=1 // pred_region
      %65 = dma.done [#allocation5], 256
    $region33: #{policy_network_forward.1} parent=1 // pred_fallthru
      _
    // Predicated region
    $region34: #{policy_network_forward.1} parent=1 // pred_check
      _
    $region35: #{policy_network_forward.1} parent=1 // pred_check_branch
      %67 = sbr.rel (0) target = $region37
    $region36: #{policy_network_forward.1} parent=1 // pred_region
      %68 = dma.done [#allocation8], 16
    $region37: #{policy_network_forward.1} parent=1 // pred_fallthru
      _
    %69 = sfence
    %v70 = vld [vmem:[%s0] sm:$0x1]
    %s71 = scalar_lea.vmem %s0, 1
    %v72 = vld [vmem:[%s71] sm:$0x1]
    %s73 = scalar_lea.vmem %s0, 2
    %v74 = vld [vmem:[%s73] sm:$0x1]
    %s75 = scalar_lea.vmem %s0, 3
    %v76 = vld [vmem:[%s75] sm:$0x1]
    %s77 = sld [smem:[#allocation2]]
    %v78 = vstv %s77
    %v79 = vmul.f32 %v78, %v70
    %s80 = sld [smem:[#allocation2 + $0x80]]
    %v81 = vstv %s80
    %v82 = vmul.f32 %v81, %v72
    %v83 = vadd.f32 %v79, %v82
    %s84 = sld [smem:[#allocation2 + $0x100]]
    %v85 = vstv %s84
    %v86 = vmul.f32 %v85, %v74
    %v87 = vadd.f32 %v83, %v86
    %s88 = sld [smem:[#allocation2 + $0x180]]
    %v89 = vstv %s88
    %v90 = vmul.f32 %v89, %v76
    %v91 = vadd.f32 %v87, %v90
    %s92 = sld [smem:[#allocation4]]
    %v93 = vstv %s92
    %v94 = vadd.f32 %v91, %v93
    %v95 = vmax.f32 %v94, 0.0
    %s96 = sld [smem:[#allocation6]]
    %s97 = sld [smem:[#allocation6 + $0x1]]
    %s98 = ssub.f32 %s96, %s97
    %v99 = vstv %s98
    %v100 = vmul.f32 %v99, %v95
    %s101 = sld [smem:[#allocation2 + $0x1]]
    %v102 = vstv %s101
    %v103 = vmul.f32 %v102, %v70
    %s104 = sld [smem:[#allocation2 + $0x81]]
    %v105 = vstv %s104
    %v106 = vmul.f32 %v105, %v72
    %v107 = vadd.f32 %v103, %v106
    %s108 = sld [smem:[#allocation2 + $0x101]]
    %v109 = vstv %s108
    %v110 = vmul.f32 %v109, %v74
    %v111 = vadd.f32 %v107, %v110
    %s112 = sld [smem:[#allocation2 + $0x181]]
    %v113 = vstv %s112
    %v114 = vmul.f32 %v113, %v76
    %v115 = vadd.f32 %v111, %v114
    %s116 = sld [smem:[#allocation4 + $0x1]]
    %v117 = vstv %s116
    %v118 = vadd.f32 %v115, %v117
    %v119 = vmax.f32 %v118, 0.0
    %s120 = sld [smem:[#allocation6 + $0x80]]
    %s121 = sld [smem:[#allocation6 + $0x81]]
    %s122 = ssub.f32 %s120, %s121
    %v123 = vstv %s122
    %v124 = vmul.f32 %v123, %v119
    %v125 = vadd.f32 %v100, %v124
    %s126 = sld [smem:[#allocation2 + $0x2]]
    %v127 = vstv %s126
    %v128 = vmul.f32 %v127, %v70
    %s129 = sld [smem:[#allocation2 + $0x82]]
    %v130 = vstv %s129
    %v131 = vmul.f32 %v130, %v72
    %v132 = vadd.f32 %v128, %v131
    %s133 = sld [smem:[#allocation2 + $0x102]]
    %v134 = vstv %s133
    %v135 = vmul.f32 %v134, %v74
    %v136 = vadd.f32 %v132, %v135
    %s137 = sld [smem:[#allocation2 + $0x182]]
    %v138 = vstv %s137
    %v139 = vmul.f32 %v138, %v76
    %v140 = vadd.f32 %v136, %v139
    %s141 = sld [smem:[#allocation4 + $0x2]]
    %v142 = vstv %s141
    %v143 = vadd.f32 %v140, %v142
    %v144 = vmax.f32 %v143, 0.0
    %s145 = sld [smem:[#allocation6 + $0x100]]
    %s146 = sld [smem:[#allocation6 + $0x101]]
    %s147 = ssub.f32 %s145, %s146
    %v148 = vstv %s147
    %v149 = vmul.f32 %v148, %v144
    %v150 = vadd.f32 %v125, %v149
    %s151 = sld [smem:[#allocation2 + $0x3]]
    %v152 = vstv %s151
    %v153 = vmul.f32 %v152, %v70
    %s154 = sld [smem:[#allocation2 + $0x83]]
    %v155 = vstv %s154
    %v156 = vmul.f32 %v155, %v72
    %v157 = vadd.f32 %v153, %v156
    %s158 = sld [smem:[#allocation2 + $0x103]]
    %v159 = vstv %s158
    %v160 = vmul.f32 %v159, %v74
    %v161 = vadd.f32 %v157, %v160
    %s162 = sld [smem:[#allocation2 + $0x183]]
    %v163 = vstv %s162
    %v164 = vmul.f32 %v163, %v76
    %v165 = vadd.f32 %v161, %v164
    %s166 = sld [smem:[#allocation4 + $0x3]]
    %v167 = vstv %s166
    %v168 = vadd.f32 %v165, %v167
    %v169 = vmax.f32 %v168, 0.0
    %s170 = sld [smem:[#allocation6 + $0x180]]
    %s171 = sld [smem:[#allocation6 + $0x181]]
    %s172 = ssub.f32 %s170, %s171
    %v173 = vstv %s172
    %v174 = vmul.f32 %v173, %v169
    %v175 = vadd.f32 %v150, %v174
    %s176 = sld [smem:[#allocation2 + $0x4]]
    %v177 = vstv %s176
    %v178 = vmul.f32 %v177, %v70
    %s179 = sld [smem:[#allocation2 + $0x84]]
    %v180 = vstv %s179
    %v181 = vmul.f32 %v180, %v72
    %v182 = vadd.f32 %v178, %v181
    %s183 = sld [smem:[#allocation2 + $0x104]]
    %v184 = vstv %s183
    %v185 = vmul.f32 %v184, %v74
    %v186 = vadd.f32 %v182, %v185
    %s187 = sld [smem:[#allocation2 + $0x184]]
    %v188 = vstv %s187
    %v189 = vmul.f32 %v188, %v76
    %v190 = vadd.f32 %v186, %v189
    %s191 = sld [smem:[#allocation4 + $0x4]]
    %v192 = vstv %s191
    %v193 = vadd.f32 %v190, %v192
    %v194 = vmax.f32 %v193, 0.0
    %s195 = sld [smem:[#allocation6 + $0x200]]
    %s196 = sld [smem:[#allocation6 + $0x201]]
    %s197 = ssub.f32 %s195, %s196
    %v198 = vstv %s197
    %v199 = vmul.f32 %v198, %v194
    %v200 = vadd.f32 %v175, %v199
    %s201 = sld [smem:[#allocation2 + $0x5]]
    %v202 = vstv %s201
    %v203 = vmul.f32 %v202, %v70
    %s204 = sld [smem:[#allocation2 + $0x85]]
    %v205 = vstv %s204
    %v206 = vmul.f32 %v205, %v72
    %v207 = vadd.f32 %v203, %v206
    %s208 = sld [smem:[#allocation2 + $0x105]]
    %v209 = vstv %s208
    %v210 = vmul.f32 %v209, %v74
    %v211 = vadd.f32 %v207, %v210
    %s212 = sld [smem:[#allocation2 + $0x185]]
    %v213 = vstv %s212
    %v214 = vmul.f32 %v213, %v76
    %v215 = vadd.f32 %v211, %v214
    %s216 = sld [smem:[#allocation4 + $0x5]]
    %v217 = vstv %s216
    %v218 = vadd.f32 %v215, %v217
    %v219 = vmax.f32 %v218, 0.0
    %s220 = sld [smem:[#allocation6 + $0x280]]
    %s221 = sld [smem:[#allocation6 + $0x281]]
    %s222 = ssub.f32 %s220, %s221
    %v223 = vstv %s222
    %v224 = vmul.f32 %v223, %v219
    %v225 = vadd.f32 %v200, %v224
    %s226 = sld [smem:[#allocation2 + $0x6]]
    %v227 = vstv %s226
    %v228 = vmul.f32 %v227, %v70
    %s229 = sld [smem:[#allocation2 + $0x86]]
    %v230 = vstv %s229
    %v231 = vmul.f32 %v230, %v72
    %v232 = vadd.f32 %v228, %v231
    %s233 = sld [smem:[#allocation2 + $0x106]]
    %v234 = vstv %s233
    %v235 = vmul.f32 %v234, %v74
    %v236 = vadd.f32 %v232, %v235
    %s237 = sld [smem:[#allocation2 + $0x186]]
    %v238 = vstv %s237
    %v239 = vmul.f32 %v238, %v76
    %v240 = vadd.f32 %v236, %v239
    %s241 = sld [smem:[#allocation4 + $0x6]]
    %v242 = vstv %s241
    %v243 = vadd.f32 %v240, %v242
    %v244 = vmax.f32 %v243, 0.0
    %s245 = sld [smem:[#allocation6 + $0x300]]
    %s246 = sld [smem:[#allocation6 + $0x301]]
    %s247 = ssub.f32 %s245, %s246
    %v248 = vstv %s247
    %v249 = vmul.f32 %v248, %v244
    %v250 = vadd.f32 %v225, %v249
    %s251 = sld [smem:[#allocation2 + $0x7]]
    %v252 = vstv %s251
    %v253 = vmul.f32 %v252, %v70
    %s254 = sld [smem:[#allocation2 + $0x87]]
    %v255 = vstv %s254
    %v256 = vmul.f32 %v255, %v72
    %v257 = vadd.f32 %v253, %v256
    %s258 = sld [smem:[#allocation2 + $0x107]]
    %v259 = vstv %s258
    %v260 = vmul.f32 %v259, %v74
    %v261 = vadd.f32 %v257, %v260
    %s262 = sld [smem:[#allocation2 + $0x187]]
    %v263 = vstv %s262
    %v264 = vmul.f32 %v263, %v76
    %v265 = vadd.f32 %v261, %v264
    %s266 = sld [smem:[#allocation4 + $0x7]]
    %v267 = vstv %s266
    %v268 = vadd.f32 %v265, %v267
    %v269 = vmax.f32 %v268, 0.0
    %s270 = sld [smem:[#allocation6 + $0x380]]
    %s271 = sld [smem:[#allocation6 + $0x381]]
    %s272 = ssub.f32 %s270, %s271
    %v273 = vstv %s272
    %v274 = vmul.f32 %v273, %v269
    %v275 = vadd.f32 %v250, %v274
    %s276 = sld [smem:[#allocation2 + $0x8]]
    %v277 = vstv %s276
    %v278 = vmul.f32 %v277, %v70
    %s279 = sld [smem:[#allocation2 + $0x88]]
    %v280 = vstv %s279
    %v281 = vmul.f32 %v280, %v72
    %v282 = vadd.f32 %v278, %v281
    %s283 = sld [smem:[#allocation2 + $0x108]]
    %v284 = vstv %s283
    %v285 = vmul.f32 %v284, %v74
    %v286 = vadd.f32 %v282, %v285
    %s287 = sld [smem:[#allocation2 + $0x188]]
    %v288 = vstv %s287
    %v289 = vmul.f32 %v288, %v76
    %v290 = vadd.f32 %v286, %v289
    %s291 = sld [smem:[#allocation4 + $0x8]]
    %v292 = vstv %s291
    %v293 = vadd.f32 %v290, %v292
    %v294 = vmax.f32 %v293, 0.0
    %s295 = sld [smem:[#allocation6 + $0x400]]
    %s296 = sld [smem:[#allocation6 + $0x401]]
    %s297 = ssub.f32 %s295, %s296
    %v298 = vstv %s297
    %v299 = vmul.f32 %v298, %v294
    %v300 = vadd.f32 %v275, %v299
    %s301 = sld [smem:[#allocation2 + $0x9]]
    %v302 = vstv %s301
    %v303 = vmul.f32 %v302, %v70
    %s304 = sld [smem:[#allocation2 + $0x89]]
    %v305 = vstv %s304
    %v306 = vmul.f32 %v305, %v72
    %v307 = vadd.f32 %v303, %v306
    %s308 = sld [smem:[#allocation2 + $0x109]]
    %v309 = vstv %s308
    %v310 = vmul.f32 %v309, %v74
    %v311 = vadd.f32 %v307, %v310
    %s312 = sld [smem:[#allocation2 + $0x189]]
    %v313 = vstv %s312
    %v314 = vmul.f32 %v313, %v76
    %v315 = vadd.f32 %v311, %v314
    %s316 = sld [smem:[#allocation4 + $0x9]]
    %v317 = vstv %s316
    %v318 = vadd.f32 %v315, %v317
    %v319 = vmax.f32 %v318, 0.0
    %s320 = sld [smem:[#allocation6 + $0x480]]
    %s321 = sld [smem:[#allocation6 + $0x481]]
    %s322 = ssub.f32 %s320, %s321
    %v323 = vstv %s322
    %v324 = vmul.f32 %v323, %v319
    %v325 = vadd.f32 %v300, %v324
    %s326 = sld [smem:[#allocation7]]
    %s327 = sld [smem:[#allocation7 + $0x1]]
    %s328 = ssub.f32 %s326, %s327
    %v329 = vstv %s328
    %v330 = vadd.f32 %v325, %v329
    %v331 = vmul.f32 %v330, 1.442695
    %v332 = vpow.pop %v331
    %v333 = vadd.f32 %v332, 1.0
    %v334 = vrcp.pop %v333
    %v335 = vsub.f32 1.0, %v334
    %336 = vst [vmem:[%s5] sm:$0x1] %v335
    %s337 = scalar_lea.vmem %s5, 1
    %338 = vst [vmem:[%s337] sm:$0x1] %v334
    // Predicated region
    $region38: #{policy_network_forward.1} parent=1 // pred_check
      _
    $region39: #{policy_network_forward.1} parent=1 // pred_check_branch
      %340 = sbr.rel (0) target = $region41
    $region40: #{policy_network_forward.1} parent=1 // pred_region
      _
    $region41: #{policy_network_forward.1} parent=1 // pred_fallthru
      _
    // Predicated region
    $region42: #{policy_network_forward.1} parent=1 // pred_check
      _
    $region43: #{policy_network_forward.1} parent=1 // pred_check_branch
      %342 = sbr.rel (0) target = $region45
    $region44: #{policy_network_forward.1} parent=1 // pred_region
      _
    $region45: #{policy_network_forward.1} parent=1 // pred_fallthru
      _
    %343 = vsyncpa [#allocation3], 1
    %344 = vsyncpa [#allocation5], 1
    %345 = vsyncpa [#allocation8], 1

</llo_original>
